<compile_context>
chip_gen: v5e
topology: v5e:2x2
jax: 0.10.0
libtpu: 0.0.40
codegen_flags: <defaults>
</compile_context>

<pallas_src>
import jax
import jax.numpy as jnp
from jax import lax
from jax.experimental import pallas as pl
from jax.experimental.pallas import tpu as pltpu


def _round_up(x, m):
    return ((x + m - 1) // m) * m


def _make_kernel(s_chunk):
    def kernel(seg_ref, data_ref, out_ref, acc_ref):
        # seg_ref : (1, TN)      int32
        # data_ref: (TN, TD)     data dtype
        # out_ref : (S_pad, TD)  data dtype (written once, on the last row step)
        # acc_ref : (S_pad, TD)  f32 scratch, resident across grid axis 1
        S = acc_ref.shape[0]

        @pl.when(pl.program_id(1) == 0)
        def _init():
            acc_ref[...] = jnp.zeros_like(acc_ref)

        seg = seg_ref[...]            # (1, TN)
        data = data_ref[...]          # (TN, TD)
        TN = data.shape[0]

        # Hoisted: built once per grid step, re-offset for every S chunk.
        row_ids = lax.broadcasted_iota(jnp.int32, (s_chunk, TN), 0)

        n_chunks = S // s_chunk       # S_pad is a multiple of s_chunk by construction
        for c in range(n_chunks):     # static, small trip count
            base = c * s_chunk
            # one_hot[s, n] = 1 iff seg[n] == base + s; out-of-range / negative
            # ids never match -> dropped (matches unsorted_segment_sum).
            one_hot = ((row_ids + base) == seg).astype(data.dtype)   # (s_chunk, TN)
            acc_ref[base:base + s_chunk, :] += jnp.dot(
                one_hot, data, preferred_element_type=jnp.float32)

        @pl.when(pl.program_id(1) == pl.num_programs(1) - 1)
        def _store():
            out_ref[...] = acc_ref[...].astype(out_ref.dtype)

    return kernel


def unsorted_segment_sum(data, segment_index, num_segments, *, tn=512):
    """data: (N, D), segment_index: (N,) int -> (num_segments, D) in data.dtype."""
    N, D = data.shape
    orig_dtype = data.dtype
    itemsize = jnp.dtype(orig_dtype).itemsize
    seg = segment_index.astype(jnp.int32)

    # Lane-dense output: pad feature dim to a multiple of 128.
    D_pad = _round_up(max(D, 128), 128)

    # Row tile: multiple of 128, no larger than the (128-rounded) row count.
    tn = max(128, _round_up(min(tn, _round_up(N, 128)), 128))

    # Segment-axis chunking bounds the (s_chunk, tn) one-hot live set for large S.
    # S_pad is a multiple of 8 so the output block is sublane-aligned.
    if num_segments <= 512:
        S_pad = _round_up(num_segments, 8)
        s_chunk = S_pad
    else:
        s_chunk = 256
        S_pad = _round_up(num_segments, s_chunk)

    # D tile: largest 128-multiple divisor of D_pad whose resident segment-axis
    # footprint (f32 accumulator + double-buffered output block) fits budget.
    td_candidates = []
    if D_pad <= 512:
        td_candidates.append(D_pad)
    for c in (512, 256, 128):
        if c <= D_pad and D_pad % c == 0 and c not in td_candidates:
            td_candidates.append(c)
    seg_axis_budget = 24 << 20
    td = td_candidates[-1]
    for cand in td_candidates:
        if S_pad * cand * (4 + 2 * itemsize) <= seg_axis_budget:
            td = cand
            break

    # VMEM budget: streamed tiles + resident accumulator + output buffers.
    # Shrink tn if we exceed ~48 MiB (v7x has 64 MiB per TensorCore).
    def _vmem_needed(tn_):
        return (2 * tn_ * td * itemsize      # double-buffered data tile
                + 2 * tn_ * 4                # double-buffered segment ids
                + 2 * S_pad * td * itemsize  # double-buffered output block
                + S_pad * td * 4             # resident f32 accumulator scratch
                + s_chunk * tn_ * itemsize   # transient one-hot
                + (2 << 20))                 # headroom

    while _vmem_needed(tn) > (48 << 20) and tn > 128:
        tn = max(128, ((tn // 2) // 128) * 128)

    N_pad = _round_up(N, tn)
    vmem_limit = int(min(64 << 20, max(32 << 20, int(1.5 * _vmem_needed(tn)))))

    # Pad inputs. Padded rows get id -1 (out of range -> dropped); padded data
    # rows/lanes are zero for good measure.
    if D_pad != D or N_pad != N:
        data = jnp.pad(data, ((0, N_pad - N), (0, D_pad - D)))
    seg2d = jnp.pad(seg, (0, N_pad - N), constant_values=-1).reshape(1, N_pad)

    grid = (D_pad // td, N_pad // tn)   # (parallel D tiles, reduction row tiles)

    out = pl.pallas_call(
        _make_kernel(s_chunk),
        out_shape=jax.ShapeDtypeStruct((S_pad, D_pad), orig_dtype),
        grid_spec=pltpu.PrefetchScalarGridSpec(
            num_scalar_prefetch=0,
            grid=grid,
            in_specs=[
                pl.BlockSpec((1, tn), lambda dj, i: (0, i)),    # segment ids
                pl.BlockSpec((tn, td), lambda dj, i: (i, dj)),  # data tile
            ],
            out_specs=pl.BlockSpec((S_pad, td), lambda dj, i: (0, dj)),
            scratch_shapes=[pltpu.VMEM((S_pad, td), jnp.float32)],
        ),
        compiler_params=pltpu.CompilerParams(
            dimension_semantics=("parallel", "arbitrary"),
            vmem_limit_bytes=vmem_limit,
        ),
    )(seg2d, data)

    return out[:num_segments, :D]


if __name__ == "__main__":
    key = jax.random.PRNGKey(0)

    # (N, D, num_segments, dtype): exercise N/D/S padding, multi-tile reduction,
    # parallel D tiling, the chunked-S path, and bf16 streaming.
    cases = [
        (300, 96, 16, jnp.float32),      # padding in N, D and S, single row tile
        (1100, 640, 40, jnp.float32),    # 3 row tiles x 5 parallel D tiles
        (256, 128, 600, jnp.float32),    # num_segments > 512 -> chunked one-hot path
        (512, 256, 32, jnp.bfloat16),    # bf16 data, f32 accumulation, bf16 output
    ]

    for idx, (N, D, S, dt) in enumerate(cases):
        k1, k2 = jax.random.split(jax.random.fold_in(key, idx))
        data = jax.random.normal(k1, (N, D), dtype=jnp.float32).astype(dt)
        segment_index = jax.random.randint(k2, (N,), 0, S, dtype=jnp.int32)

        out = jax.block_until_ready(unsorted_segment_sum(data, segment_index, S))
        assert out.shape == (S, D), f"bad shape on case {idx}: {out.shape}"
        assert out.dtype == dt, f"bad dtype on case {idx}: {out.dtype}"

        ref = jax.ops.segment_sum(data.astype(jnp.float32), segment_index,
                                  num_segments=S)
        if dt == jnp.float32:
            assert jnp.allclose(out, ref, atol=1e-4, rtol=1e-4), \
                f"mismatch on case {idx}"
        else:
            assert jnp.allclose(out.astype(jnp.float32), ref,
                                atol=5e-2, rtol=5e-2), f"mismatch on case {idx}"

    print("KERNEL_OK")
</pallas_src>

<mosaic_0001>
module attributes {stable_mosaic.version = 11 : i64} {
  func.func @kernel(%arg0: i32, %arg1: i32, %arg2: memref<1x384xi32, #tpu.memory_space<vmem>>, %arg3: memref<384x128xf32, #tpu.memory_space<vmem>>, %arg4: memref<16x128xf32, #tpu.memory_space<vmem>>, %arg5: memref<16x128xf32, #tpu.memory_space<vmem>>) attributes {dimension_semantics = [#tpu.dimension_semantics<parallel>, #tpu.dimension_semantics<arbitrary>], iteration_bounds = array<i64: 1, 1>, scalar_prefetch = 0 : i64, scratch_operands = 1 : i64, tpu.core_type = #tpu.core_type<tc>, window_params = [{transform_indices = @transform_0, window_bounds = array<i64: 1, 384>}, {transform_indices = @transform_1, window_bounds = array<i64: 384, 128>}, {transform_indices = @transform_2, window_bounds = array<i64: 16, 128>}]} {
    %c0_i32 = arith.constant 0 : i32
    %0 = arith.cmpi eq, %arg1, %c0_i32 : i32
    %1 = arith.extui %0 : i1 to i32
    %c0_i32_0 = arith.constant 0 : i32
    %2 = arith.cmpi ne, %1, %c0_i32_0 : i32
    scf.if %2 {
      %cst_11 = arith.constant 0.000000e+00 : f32
      %19 = vector.broadcast %cst_11 : f32 to vector<16x128xf32>
      %c0_12 = arith.constant 0 : index
      %c0_13 = arith.constant 0 : index
      %20 = vector.load %arg5[%c0_12, %c0_13] : memref<16x128xf32, #tpu.memory_space<vmem>>, vector<16x128xf32>
      tpu.vector_store %arg5[%c0_12, %c0_13], %19 {strides = array<i32>} : memref<16x128xf32, #tpu.memory_space<vmem>>, vector<16x128xf32>,
    } else {
    }
    %c0 = arith.constant 0 : index
    %c0_1 = arith.constant 0 : index
    %3 = vector.load %arg2[%c0, %c0_1] : memref<1x384xi32, #tpu.memory_space<vmem>>, vector<1x384xi32>
    %c0_2 = arith.constant 0 : index
    %c0_3 = arith.constant 0 : index
    %4 = vector.load %arg3[%c0_2, %c0_3] : memref<384x128xf32, #tpu.memory_space<vmem>>, vector<384x128xf32>
    %5 = tpu.iota {dimensions = array<i32: 0>} : vector<16x384xi32>
    %c0_i32_4 = arith.constant 0 : i32
    %6 = vector.broadcast %c0_i32_4 : i32 to vector<16x384xi32>
    %7 = arith.addi %5, %6 : vector<16x384xi32>
    %8 = vector.broadcast %3 : vector<1x384xi32> to vector<16x384xi32>
    %9 = arith.cmpi eq, %7, %8 : vector<16x384xi32>
    %10 = arith.extui %9 : vector<16x384xi1> to vector<16x384xi32>
    %11 = arith.sitofp %10 : vector<16x384xi32> to vector<16x384xf32>
    %c0_5 = arith.constant 0 : index
    %c0_6 = arith.constant 0 : index
    %12 = vector.load %arg5[%c0_5, %c0_6] : memref<16x128xf32, #tpu.memory_space<vmem>>, vector<16x128xf32>
    %cst = arith.constant dense<0.000000e+00> : vector<16x128xf32>
    %13 = tpu.matmul %11, %4, %cst {dimension_numbers = #tpu.dot_dimension_numbers<[1], [0], [0], [1], [0, 0, 1, 1], [], []>} : vector<16x384xf32>, vector<384x128xf32>, vector<16x128xf32> -> vector<16x128xf32>
    %14 = arith.addf %12, %13 : vector<16x128xf32>
    %c0_7 = arith.constant 0 : index
    %c0_8 = arith.constant 0 : index
    %15 = vector.load %arg5[%c0_7, %c0_8] : memref<16x128xf32, #tpu.memory_space<vmem>>, vector<16x128xf32>
    tpu.vector_store %arg5[%c0_7, %c0_8], %14 {strides = array<i32>} : memref<16x128xf32, #tpu.memory_space<vmem>>, vector<16x128xf32>,
    %c0_i32_9 = arith.constant 0 : i32
    %16 = arith.cmpi eq, %arg1, %c0_i32_9 : i32
    %17 = arith.extui %16 : i1 to i32
    %c0_i32_10 = arith.constant 0 : i32
    %18 = arith.cmpi ne, %17, %c0_i32_10 : i32
    scf.if %18 {
      %c0_11 = arith.constant 0 : index
      %c0_12 = arith.constant 0 : index
      %19 = vector.load %arg5[%c0_11, %c0_12] : memref<16x128xf32, #tpu.memory_space<vmem>>, vector<16x128xf32>
      %c0_13 = arith.constant 0 : index
      %c0_14 = arith.constant 0 : index
      %20 = vector.load %arg4[%c0_13, %c0_14] : memref<16x128xf32, #tpu.memory_space<vmem>>, vector<16x128xf32>
      tpu.vector_store %arg4[%c0_13, %c0_14], %19 {strides = array<i32>} : memref<16x128xf32, #tpu.memory_space<vmem>>, vector<16x128xf32>,
    } else {
    }
    return
  }
  func.func @transform_0(%arg0: i32, %arg1: i32) -> (i32, i32) {
    %c0_i32 = arith.constant 0 : i32
    %c0_i32_0 = arith.constant 0 : i32
    return %c0_i32, %arg1 : i32, i32
  }
  func.func @transform_1(%arg0: i32, %arg1: i32) -> (i32, i32) {
    %c0_i32 = arith.constant 0 : i32
    return %arg1, %arg0 : i32, i32
  }
  func.func @transform_2(%arg0: i32, %arg1: i32) -> (i32, i32) {
    %c0_i32 = arith.constant 0 : i32
    %c0_i32_0 = arith.constant 0 : i32
    return %c0_i32, %arg0 : i32, i32
  }
}

</mosaic_0001>

<llo_original>
// kernel: tpu_custom_call.1
$region0: #{tpu_custom_call.1}
  #allocation0 [shape = 'u32[]', space=smem, size = 0x4, offset = 0x4, fixed_abs, tag = 'smem constant byte address 0x4 - core index']
  #allocation1 [shape = 'u32[72,128]{1,0:T(1,128)}', space=vmem, size = 0x9000, scoped, tag = 'internal scratch']
  #allocation2 [shape = 'f32[16,128]{1,0:T(8,128)}', space=vmem, size = 0x2000, scoped, tag = 'scratch operand']
  %s0 = inlined_call_operand.hbm [shape: s32[1,384], index: 0, kind: input, shape index: {}]
  %s1 = inlined_call_operand.hbm [shape: f32[384,128], index: 1, kind: input, shape index: {}]
  %s2 = inlined_call_operand.hbm [shape: f32[16,128], index: 2, kind: output, shape index: {}]
  %s3 = sld [smem:[#allocation0]]
  $region34: #{tpu_custom_call.1} parent=0
    _
  %s5 = ssub.s32 1, %s3
  %s6 = scalar_select 0, %s5, %s3
  $region1: #{tpu_custom_call.1} parent=0
    #allocation3 [shape = 'u8[1536]{0}', space=vmem, size = 0x800, scoped, tag = 'input window, operand 0, single buffered']
    #allocation4 [shape = 's32[1]{0}', space=sflag, size = 0x4, scoped, tag = 'scoped memory for tpu_custom_call.1']
    #allocation5 [shape = 's32[1]{0}', space=sflag, size = 0x4, scoped, tag = 'scoped memory for tpu_custom_call.1']
    #allocation6 [shape = 'u8[196608]{0}', space=vmem, size = 0x30000, scoped, tag = 'input window, operand 1, single buffered']
    #allocation7 [shape = 's32[1]{0}', space=sflag, size = 0x4, scoped, tag = 'scoped memory for tpu_custom_call.1']
    #allocation8 [shape = 'u8[8192]{0}', space=vmem, size = 0x2000, scoped, tag = 'output window, operand 0, single buffered']
    %7 = vsyncpa [#allocation4], 0
    %8 = vsyncpa [#allocation7], 0
    %9 = vsyncpa [#allocation5], 0
    // Predicated region
    $region2: #{tpu_custom_call.1} parent=1 // pred_check
      _
    $region3: #{tpu_custom_call.1} parent=1 // pred_check_branch
      %11 = sbr.rel (0) target = $region5
    $region4: #{tpu_custom_call.1} parent=1 // pred_region
      %13 = vsyncadd [#allocation4], 0
      %s15 = sshll.u32 %s0, 4
      %s16 = int_to_ptr.hbm [resolvable:$true] %s15
      %s17 = sshll.u32 [#allocation3], 4
      %s18 = int_to_ptr.vmem [resolvable:$true] %s17
      %20 = dma.hbm_to_vmem [thread:$0]  %s16, 48, %s18, [#allocation4]
    $region5: #{tpu_custom_call.1} parent=1 // pred_fallthru
      _
    // Predicated region
    $region6: #{tpu_custom_call.1} parent=1 // pred_check
      _
    $region7: #{tpu_custom_call.1} parent=1 // pred_check_branch
      %22 = sbr.rel (0) target = $region9
    $region8: #{tpu_custom_call.1} parent=1 // pred_region
      %24 = vsyncadd [#allocation7], 0
      %s25 = sshll.u32 %s1, 4
      %s26 = int_to_ptr.hbm [resolvable:$true] %s25
      %s27 = sshll.u32 [#allocation6], 4
      %s28 = int_to_ptr.vmem [resolvable:$true] %s27
      %33 = dma.hbm_to_vmem [thread:$0]  %s26, 6144, %s28, [#allocation7], 128, 128, 8
    $region9: #{tpu_custom_call.1} parent=1 // pred_fallthru
      _
    // Predicated region
    $region10: #{tpu_custom_call.1} parent=1 // pred_check
      _
    $region11: #{tpu_custom_call.1} parent=1 // pred_check_branch
      %35 = sbr.rel (0) target = $region13
    $region12: #{tpu_custom_call.1} parent=1 // pred_region
      %37 = dma.done [#allocation4], 48
    $region13: #{tpu_custom_call.1} parent=1 // pred_fallthru
      _
    // Predicated region
    $region14: #{tpu_custom_call.1} parent=1 // pred_check
      _
    $region15: #{tpu_custom_call.1} parent=1 // pred_check_branch
      %39 = sbr.rel (0) target = $region17
    $region16: #{tpu_custom_call.1} parent=1 // pred_region
      %41 = dma.done [#allocation7], 6144
    $region17: #{tpu_custom_call.1} parent=1 // pred_fallthru
      _
    %p42 = scmp.eq.s32.totalorder 0, 0
    // Predicated region
    $region18: #{tpu_custom_call.1} parent=1 // pred_check
      %p43 = pneg %p42
    $region19: #{tpu_custom_call.1} parent=1 // pred_check_branch
      %45 = sbr.rel (%p43) target = $region21
    $region20: #{tpu_custom_call.1} parent=1 // pred_region
      %46 = vst [vmem:[#allocation2] sm:$0xff] 0.0
      %47 = vst [vmem:[#allocation2 + $0x8] sm:$0xff] 0.0
    $region21: #{tpu_custom_call.1} parent=1 // pred_fallthru
      _
    %v48 = vld [vmem:[#allocation3] sm:$0x7]
    %v49 = vld [vmem:[#allocation6] sm:$0xff]
    %v50 = vld [vmem:[#allocation6 + $0x8] sm:$0xff]
    %v51 = vld [vmem:[#allocation6 + $0x10] sm:$0xff]
    %v52 = vld [vmem:[#allocation6 + $0x18] sm:$0xff]
    %v53 = vld [vmem:[#allocation6 + $0x20] sm:$0xff]
    %v54 = vld [vmem:[#allocation6 + $0x28] sm:$0xff]
    %v55 = vld [vmem:[#allocation6 + $0x30] sm:$0xff]
    %v56 = vld [vmem:[#allocation6 + $0x38] sm:$0xff]
    %v57 = vld [vmem:[#allocation6 + $0x40] sm:$0xff]
    %v58 = vld [vmem:[#allocation6 + $0x48] sm:$0xff]
    %v59 = vld [vmem:[#allocation6 + $0x50] sm:$0xff]
    %v60 = vld [vmem:[#allocation6 + $0x58] sm:$0xff]
    %v61 = vld [vmem:[#allocation6 + $0x60] sm:$0xff]
    %v62 = vld [vmem:[#allocation6 + $0x68] sm:$0xff]
    %v63 = vld [vmem:[#allocation6 + $0x70] sm:$0xff]
    %v64 = vld [vmem:[#allocation6 + $0x78] sm:$0xff]
    %v65 = vld [vmem:[#allocation6 + $0x80] sm:$0xff]
    %v66 = vld [vmem:[#allocation6 + $0x88] sm:$0xff]
    %v67 = vld [vmem:[#allocation6 + $0x90] sm:$0xff]
    %v68 = vld [vmem:[#allocation6 + $0x98] sm:$0xff]
    %v69 = vld [vmem:[#allocation6 + $0xa0] sm:$0xff]
    %v70 = vld [vmem:[#allocation6 + $0xa8] sm:$0xff]
    %v71 = vld [vmem:[#allocation6 + $0xb0] sm:$0xff]
    %v72 = vld [vmem:[#allocation6 + $0xb8] sm:$0xff]
    %v73 = vld [vmem:[#allocation6 + $0xc0] sm:$0xff]
    %v74 = vld [vmem:[#allocation6 + $0xc8] sm:$0xff]
    %v75 = vld [vmem:[#allocation6 + $0xd0] sm:$0xff]
    %v76 = vld [vmem:[#allocation6 + $0xd8] sm:$0xff]
    %v77 = vld [vmem:[#allocation6 + $0xe0] sm:$0xff]
    %v78 = vld [vmem:[#allocation6 + $0xe8] sm:$0xff]
    %v79 = vld [vmem:[#allocation6 + $0xf0] sm:$0xff]
    %v80 = vld [vmem:[#allocation6 + $0xf8] sm:$0xff]
    %v81 = vld [vmem:[#allocation6 + $0x100] sm:$0xff]
    %v82 = vld [vmem:[#allocation6 + $0x108] sm:$0xff]
    %v83 = vld [vmem:[#allocation6 + $0x110] sm:$0xff]
    %v84 = vld [vmem:[#allocation6 + $0x118] sm:$0xff]
    %v85 = vld [vmem:[#allocation6 + $0x120] sm:$0xff]
    %v86 = vld [vmem:[#allocation6 + $0x128] sm:$0xff]
    %v87 = vld [vmem:[#allocation6 + $0x130] sm:$0xff]
    %v88 = vld [vmem:[#allocation6 + $0x138] sm:$0xff]
    %v89 = vld [vmem:[#allocation6 + $0x140] sm:$0xff]
    %v90 = vld [vmem:[#allocation6 + $0x148] sm:$0xff]
    %v91 = vld [vmem:[#allocation6 + $0x150] sm:$0xff]
    %v92 = vld [vmem:[#allocation6 + $0x158] sm:$0xff]
    %v93 = vld [vmem:[#allocation6 + $0x160] sm:$0xff]
    %v94 = vld [vmem:[#allocation6 + $0x168] sm:$0xff]
    %v95 = vld [vmem:[#allocation6 + $0x170] sm:$0xff]
    %v96 = vld [vmem:[#allocation6 + $0x178] sm:$0xff]
    %v97 = vlaneseq
    %v98 = vshrl.u32 %v97, 7
    %v99 = vadd.s32 %v98, 8
    %v100 = vperm.slane %v48, 0
    %v101 = vperm.slane %v48, 1
    %v102 = vperm.slane %v48, 2
    %vm103 = vcmp.eq.s32.totalorder %v98, %v100
    %vm104 = vcmp.eq.s32.totalorder %v98, %v101
    %vm105 = vcmp.eq.s32.totalorder %v98, %v102
    %vm106 = vcmp.eq.s32.totalorder %v99, %v100
    %vm107 = vcmp.eq.s32.totalorder %v99, %v101
    %vm108 = vcmp.eq.s32.totalorder %v99, %v102
    %v109 = vsel %vm103, 1, 0
    %v110 = vsel %vm104, 1, 0
    %v111 = vsel %vm105, 1, 0
    %v112 = vsel %vm106, 1, 0
    %v113 = vsel %vm107, 1, 0
    %v114 = vsel %vm108, 1, 0
    %v115 = vcvt.s32.f32 %v109
    %v116 = vcvt.s32.f32 %v110
    %v117 = vcvt.s32.f32 %v111
    %v118 = vcvt.s32.f32 %v112
    %v119 = vcvt.s32.f32 %v113
    %v120 = vcvt.s32.f32 %v114
    %v121 = vld [vmem:[#allocation2] sm:$0xff]
    %v122 = vld [vmem:[#allocation2 + $0x8] sm:$0xff]
    %123 = vmatpush.msra.mxu0 %v64
    %124 = vmatpush.msra.mxu0 %v63
    %125 = vmatpush.msra.mxu0 %v62
    %126 = vmatpush.msra.mxu0 %v61
    %127 = vmatpush.msra.mxu0 %v60
    %128 = vmatpush.msra.mxu0 %v59
    %129 = vmatpush.msra.mxu0 %v58
    %130 = vmatpush.msra.mxu0 %v57
    %131 = vmatpush.msra.mxu0 %v56
    %132 = vmatpush.msra.mxu0 %v55
    %133 = vmatpush.msra.mxu0 %v54
    %134 = vmatpush.msra.mxu0 %v53
    %135 = vmatpush.msra.mxu0 %v52
    %136 = vmatpush.msra.mxu0 %v51
    %137 = vmatpush.msra.mxu0 %v50
    %138 = vmatpush.msra.mxu0 %v49
    %139 = vmatmul.f32.gmra.mxu0 %v115
    %v140 = vpop.f32.mrf.mxu0
    %v141 = vadd.f32 0.0, %v140
    %142 = vmatmul.f32.gmra.mxu0 %v118
    %v143 = vpop.f32.mrf.mxu0
    %v144 = vadd.f32 0.0, %v143
    %145 = vdwg.mxu0
    %146 = vmatpush.msra.mxu0 %v80
    %147 = vmatpush.msra.mxu0 %v79
    %148 = vmatpush.msra.mxu0 %v78
    %149 = vmatpush.msra.mxu0 %v77
    %150 = vmatpush.msra.mxu0 %v76
    %151 = vmatpush.msra.mxu0 %v75
    %152 = vmatpush.msra.mxu0 %v74
    %153 = vmatpush.msra.mxu0 %v73
    %154 = vmatpush.msra.mxu0 %v72
    %155 = vmatpush.msra.mxu0 %v71
    %156 = vmatpush.msra.mxu0 %v70
    %157 = vmatpush.msra.mxu0 %v69
    %158 = vmatpush.msra.mxu0 %v68
    %159 = vmatpush.msra.mxu0 %v67
    %160 = vmatpush.msra.mxu0 %v66
    %161 = vmatpush.msra.mxu0 %v65
    %162 = vmatmul.f32.gmra.mxu0 %v116
    %v163 = vpop.f32.mrf.mxu0
    %v164 = vadd.f32 %v141, %v163
    %165 = vmatmul.f32.gmra.mxu0 %v119
    %v166 = vpop.f32.mrf.mxu0
    %v167 = vadd.f32 %v144, %v166
    %168 = vdwg.mxu0
    %169 = vmatpush.msra.mxu0 %v96
    %170 = vmatpush.msra.mxu0 %v95
    %171 = vmatpush.msra.mxu0 %v94
    %172 = vmatpush.msra.mxu0 %v93
    %173 = vmatpush.msra.mxu0 %v92
    %174 = vmatpush.msra.mxu0 %v91
    %175 = vmatpush.msra.mxu0 %v90
    %176 = vmatpush.msra.mxu0 %v89
    %177 = vmatpush.msra.mxu0 %v88
    %178 = vmatpush.msra.mxu0 %v87
    %179 = vmatpush.msra.mxu0 %v86
    %180 = vmatpush.msra.mxu0 %v85
    %181 = vmatpush.msra.mxu0 %v84
    %182 = vmatpush.msra.mxu0 %v83
    %183 = vmatpush.msra.mxu0 %v82
    %184 = vmatpush.msra.mxu0 %v81
    %185 = vmatmul.f32.gmra.mxu0 %v117
    %v186 = vpop.f32.mrf.mxu0
    %v187 = vadd.f32 %v164, %v186
    %188 = vmatmul.f32.gmra.mxu0 %v120
    %v189 = vpop.f32.mrf.mxu0
    %v190 = vadd.f32 %v167, %v189
    %191 = vdwg.mxu0
    %v192 = vadd.f32 %v121, %v187
    %v193 = vadd.f32 %v122, %v190
    %194 = vst [vmem:[#allocation2] sm:$0xff] %v192
    %195 = vst [vmem:[#allocation2 + $0x8] sm:$0xff] %v193
    // Predicated region
    $region22: #{tpu_custom_call.1} parent=1 // pred_check
      %p196 = pneg %p42
    $region23: #{tpu_custom_call.1} parent=1 // pred_check_branch
      %198 = sbr.rel (%p196) target = $region25
    $region24: #{tpu_custom_call.1} parent=1 // pred_region
      %v199 = vld [vmem:[#allocation2] sm:$0xff]
      %v200 = vld [vmem:[#allocation2 + $0x8] sm:$0xff]
      %201 = vst [vmem:[#allocation8] sm:$0xff] %v199
      %202 = vst [vmem:[#allocation8 + $0x8] sm:$0xff] %v200
    $region25: #{tpu_custom_call.1} parent=1 // pred_fallthru
      _
    // Predicated region
    $region26: #{tpu_custom_call.1} parent=1 // pred_check
      _
    $region27: #{tpu_custom_call.1} parent=1 // pred_check_branch
      %204 = sbr.rel (0) target = $region29
    $region28: #{tpu_custom_call.1} parent=1 // pred_region
      %206 = vsyncadd [#allocation5], 0
      %s207 = sshll.u32 [#allocation8], 4
      %s208 = int_to_ptr.vmem [resolvable:$true] %s207
      %s209 = sshll.u32 %s2, 4
      %s210 = int_to_ptr.hbm [resolvable:$true] %s209
      %215 = dma.vmem_to_hbm [thread:$0]  %s208, 256, %s210, [#allocation5], 128, 128, 8
    $region29: #{tpu_custom_call.1} parent=1 // pred_fallthru
      _
    // Predicated region
    $region30: #{tpu_custom_call.1} parent=1 // pred_check
      _
    $region31: #{tpu_custom_call.1} parent=1 // pred_check_branch
      %217 = sbr.rel (0) target = $region33
    $region32: #{tpu_custom_call.1} parent=1 // pred_region
      %219 = dma.done [#allocation5], 256
    $region33: #{tpu_custom_call.1} parent=1 // pred_fallthru
      _
    %220 = vsyncpa [#allocation4], 1
    %221 = vsyncpa [#allocation7], 1
    %222 = vsyncpa [#allocation5], 1

</llo_original>
